<compile_context>
chip_gen: v7x
topology: tpu7x:2x2x1
jax: 0.10.0
libtpu: 0.0.40
codegen_flags: <defaults>
</compile_context>

<pallas_src>
import functools
import math

import jax
import jax.numpy as jnp
from jax import lax
from jax.experimental import pallas as pl
from jax.experimental.pallas import tpu as pltpu


# ---------------------------------------------------------------------------
# Kernel
# ---------------------------------------------------------------------------
def _conv_bn_lrelu_kernel(x_ref, w_ref, shift_ref, o_ref, *,
                          relu_slop, tap_offsets, n_out):
    # x_ref:     (C_in, (TH+KS)*WPp)  halo'd, zero-padded, row-flattened input
    # w_ref:     (C_out, KS*KS*C_in)  conv weight with BN scale folded in
    # shift_ref: (C_out, 1)           folded bias/BN shift (f32)
    # o_ref:     (C_out, TH*WPp)      lane-dense output block (mult. of 128)
    #
    # In-VMEM im2col: each tap is a contiguous static slice of the flattened
    # padded rows (tap (ky,kx) lives at offset ky*WPp + kx).  No HBM patches.
    patches = jnp.concatenate(
        [x_ref[:, d:d + n_out] for d in tap_offsets], axis=0)       # (K, N)
    acc = jnp.dot(w_ref[...], patches,
                  preferred_element_type=jnp.float32)               # (C_out, N)
    y = acc + shift_ref[...]
    y = jnp.where(y >= 0, y, relu_slop * y)                         # LeakyReLU
    o_ref[...] = y.astype(o_ref.dtype)


# ---------------------------------------------------------------------------
# Tiling helpers (generation-aware VMEM budgeting)
# ---------------------------------------------------------------------------
def _round_up(x, m):
    return ((x + m - 1) // m) * m


def _vmem_capacity_bytes():
    # v5e/v6e: 128 MiB per TensorCore, v7x: 64 MiB.  Conservative fallback.
    try:
        return int(pltpu.get_tpu_info().vmem_capacity_bytes)
    except Exception:
        return 64 * 1024 * 1024


def _pick_row_tile(oh, wpp, c_in, c_out, ks, itemsize, vmem_cap):
    """Pick the output-row tile TH.

    Constraints:
      * TH * WPp is a multiple of 128  -> lane-dense, unmasked output stores.
      * 2x(input block + output block) + resident weight/shift fits a budget
        derived from this generation's physical VMEM (double-buffered blocks).
    """
    m = 128 // math.gcd(wpp, 128)            # smallest TH step that is lane-dense
    th_cover = _round_up(max(oh, 1), m)      # one tile covering all output rows

    def footprint(th):
        in_blk = c_in * (th + ks) * wpp * itemsize
        out_blk = c_out * th * wpp * itemsize
        consts = c_out * (ks * ks * c_in * itemsize + 4)   # weight + shift
        return 2 * (in_blk + out_blk) + 2 * consts

    budget = max(vmem_cap // 4, 4 * 1024 * 1024)
    th = m
    while th < th_cover and footprint(th + m) <= budget:
        th += m
    # TODO(synk): if footprint(m) still exceeds the budget (very large
    # C_in * width), add a channel-chunk reduction grid axis ("arbitrary")
    # with an f32 VMEM accumulator instead of shrinking the row tile further.
    return th, footprint(th)


# ---------------------------------------------------------------------------
# Wrapper
# ---------------------------------------------------------------------------
def conv_block_forward(x, weight, shift, *, stride, padding, relu_slop):
    """Fused Conv2d + folded-BN/bias + LeakyReLU in one Pallas kernel.

    `weight` must already have the BN scale folded in.  The conv is computed
    at stride 1 (flat-shift trick) and subsampled in the wrapper for stride>1.
    """
    B, C_in, H, W = x.shape
    C_out, _, KH, KW = weight.shape
    assert KH == KW, "square kernels only"
    KS = KH
    p = padding

    # stride-1 output extent (stride>1 handled by subsampling at the end).
    OH = H + 2 * p - KS + 1
    OW = W + 2 * p - KS + 1
    assert OH > 0 and OW > 0

    dtype = x.dtype
    itemsize = jnp.dtype(dtype).itemsize

    # Row pitch: padded width rounded up to a multiple of 8 (so a multiple-of-m
    # row tile gives a flattened output block that is a multiple of 128 lanes).
    WPp = _round_up(max(W + 2 * p, OW + KS - 1), 8)

    vmem_cap = _vmem_capacity_bytes()
    TH, footprint = _pick_row_tile(OH, WPp, C_in, C_out, KS, itemsize, vmem_cap)
    NT = _round_up(OH, TH) // TH
    OHp = NT * TH                       # padded output rows
    HPp = OHp + KS                      # padded input rows (incl. halo for last tile)
    LIN = (TH + KS) * WPp               # flattened input block length (with halo)
    NOUT = TH * WPp                     # flattened output block length (% 128 == 0)

    # ---- layout plumbing (XLA glue, ~1.1-1.5x the input; no 9x im2col) ----
    xpad = jnp.pad(x, ((0, 0), (0, 0), (p, HPp - p - H), (p, WPp - p - W)))
    rows = [xpad[:, :, r * TH: r * TH + TH + KS, :] for r in range(NT)]
    xrows = jnp.stack(rows, axis=1).reshape(B * NT, C_in, LIN)   # stays x.dtype

    # Flattened weight, tap-major / channel-minor (matches in-kernel patches).
    w2 = jnp.transpose(weight, (0, 2, 3, 1)).reshape(C_out, KS * KS * C_in)
    w2 = w2.astype(dtype)                       # stream in input dtype, f32 acc
    shift2 = shift.reshape(C_out, 1).astype(jnp.float32)

    tap_offsets = tuple(ky * WPp + kx for ky in range(KS) for kx in range(KS))

    vmem_limit = int(min((vmem_cap * 3) // 4,
                         max(2 * footprint, 32 * 1024 * 1024)))

    kernel = functools.partial(_conv_bn_lrelu_kernel,
                               relu_slop=float(relu_slop),
                               tap_offsets=tap_offsets, n_out=NOUT)

    out_flat = pl.pallas_call(
        kernel,
        out_shape=jax.ShapeDtypeStruct((B * NT, C_out, NOUT), dtype),
        grid=(B * NT,),          # batch folded into row-tile axis (megacore)
        in_specs=[
            # halo'd input rows for this (batch, row-tile)
            pl.BlockSpec((pl.Squeezed(), C_in, LIN), lambda i: (i, 0, 0)),
            # grid-invariant -> fetched once, stays resident in VMEM
            pl.BlockSpec((C_out, KS * KS * C_in), lambda i: (0, 0)),
            pl.BlockSpec((C_out, 1), lambda i: (0, 0)),
        ],
        out_specs=pl.BlockSpec((pl.Squeezed(), C_out, NOUT), lambda i: (i, 0, 0)),
        compiler_params=pltpu.CompilerParams(
            dimension_semantics=("parallel",),
            vmem_limit_bytes=vmem_limit),
    )(xrows, w2, shift2)

    out = out_flat.reshape(B, NT, C_out, TH, WPp)
    out = jnp.transpose(out, (0, 2, 1, 3, 4)).reshape(B, C_out, OHp, WPp)
    out = out[:, :, :OH, :OW]
    if stride != 1:
        out = out[:, :, ::stride, ::stride]
    return out


# ---------------------------------------------------------------------------
# Module
# ---------------------------------------------------------------------------
class ConvBlock:
    """JAX/Pallas equivalent of the PyTorch ConvBlock forward pass."""

    def __init__(self, in_fea, out_fea, kernel_size=3, stride=1, padding=1,
                 norm='bn', relu_slop=0.2, dropout=None, *, key, dtype=jnp.float32):
        if norm in ('in', 'ln'):
            # TODO(synk): InstanceNorm2d / LayerNorm need in-kernel per-sample
            # statistics (extra reduction pass); only 'bn' (running-stats fold)
            # and no-norm are implemented.
            raise NotImplementedError("norm='in'/'ln' not implemented")
        self.in_fea, self.out_fea = in_fea, out_fea
        self.kernel_size, self.stride, self.padding = kernel_size, stride, padding
        self.norm, self.relu_slop, self.dropout = norm, relu_slop, dropout

        k_w, k_b, k_g, k_be, k_m, k_v = jax.random.split(key, 6)
        fan_in = in_fea * kernel_size * kernel_size
        bound = 1.0 / math.sqrt(fan_in)
        self.weight = jax.random.uniform(
            k_w, (out_fea, in_fea, kernel_size, kernel_size), dtype,
            minval=-bound, maxval=bound)
        self.bias = jax.random.uniform(
            k_b, (out_fea,), dtype, minval=-bound, maxval=bound)

        # BatchNorm2d parameters + (non-trivial) running statistics, eval mode.
        self.eps = 1e-5
        self.gamma = 1.0 + 0.1 * jax.random.normal(k_g, (out_fea,), dtype)
        self.beta = 0.1 * jax.random.normal(k_be, (out_fea,), dtype)
        self.running_mean = 0.1 * jax.random.normal(k_m, (out_fea,), dtype)
        self.running_var = 1.0 + 0.1 * jnp.abs(jax.random.normal(k_v, (out_fea,), dtype))

    def _folded_params(self):
        """Fold eval-mode BN + conv bias into (weight, shift)."""
        w = self.weight.astype(jnp.float32)
        b = self.bias.astype(jnp.float32)
        if self.norm == 'bn':
            # TODO(synk): training-mode BatchNorm (batch statistics) would need
            # an extra reduction pass; eval-mode running-stats BN folded here.
            scale = self.gamma.astype(jnp.float32) / jnp.sqrt(
                self.running_var.astype(jnp.float32) + self.eps)
            w = w * scale[:, None, None, None]
            shift = (self.beta.astype(jnp.float32)
                     + (b - self.running_mean.astype(jnp.float32)) * scale)
        else:
            shift = b
        return w, shift

    def __call__(self, x):
        w, shift = self._folded_params()
        # TODO(synk): training-mode Dropout2d not implemented; inference mode is
        # identity (and dropout=None by default, so no dropout layer exists).
        return conv_block_forward(
            x, w, shift,
            stride=self.stride, padding=self.padding, relu_slop=self.relu_slop)

    def reference(self, x):
        """Plain-JAX reference (same math, no Pallas) for correctness checking."""
        out = lax.conv_general_dilated(
            x.astype(jnp.float32), self.weight.astype(jnp.float32),
            window_strides=(self.stride, self.stride),
            padding=[(self.padding, self.padding)] * 2,
            dimension_numbers=('NCHW', 'OIHW', 'NCHW'))
        out = out + self.bias[None, :, None, None]
        if self.norm == 'bn':
            out = (out - self.running_mean[None, :, None, None]) / jnp.sqrt(
                self.running_var + self.eps)[None, :, None, None]
            out = out * self.gamma[None, :, None, None] + self.beta[None, :, None, None]
        out = jnp.where(out >= 0, out, self.relu_slop * out)
        return out.astype(x.dtype)


if __name__ == "__main__":
    key = jax.random.PRNGKey(0)
    k_x, k_p = jax.random.split(key)

    B, C_in, H, W = 2, 4, 16, 16
    C_out = 8
    x = jax.random.normal(k_x, (B, C_in, H, W), dtype=jnp.float32)

    block = ConvBlock(C_in, C_out, key=k_p)
    y = jax.block_until_ready(block(x))

    ref = jax.block_until_ready(block.reference(x))
    assert y.shape == (B, C_out, H, W), y.shape
    assert y.dtype == x.dtype
    max_err = float(jnp.max(jnp.abs(y - ref)))
    assert bool(jnp.allclose(y, ref, atol=1e-4, rtol=1e-4)), max_err

    print("KERNEL_OK")
</pallas_src>

<mosaic_0001>
module attributes {stable_mosaic.version = 11 : i64} {
  func.func @_conv_bn_lrelu_kernel(%arg0: i32, %arg1: memref<1x4x456xf32, #tpu.memory_space<vmem>>, %arg2: memref<8x36xf32, #tpu.memory_space<vmem>>, %arg3: memref<8x1xf32, #tpu.memory_space<vmem>>, %arg4: memref<1x8x384xf32, #tpu.memory_space<vmem>>) attributes {dimension_semantics = [#tpu.dimension_semantics<parallel>], iteration_bounds = array<i64: 2>, scalar_prefetch = 0 : i64, scratch_operands = 0 : i64, tpu.core_type = #tpu.core_type<tc>, window_params = [{transform_indices = @transform_0, window_bounds = array<i64: 1, 4, 456>}, {pipeline_mode = #tpu.pipeline_mode<synchronous>, transform_indices = @transform_1, window_bounds = array<i64: 8, 36>}, {pipeline_mode = #tpu.pipeline_mode<synchronous>, transform_indices = @transform_2, window_bounds = array<i64: 8, 1>}, {transform_indices = @transform_3, window_bounds = array<i64: 1, 8, 384>}]} {
    %c0 = arith.constant 0 : index
    %c0_0 = arith.constant 0 : index
    %c0_1 = arith.constant 0 : index
    %0 = vector.load %arg1[%c0, %c0_0, %c0_1] : memref<1x4x456xf32, #tpu.memory_space<vmem>>, vector<1x4x384xf32>
    %1 = vector.shape_cast %0 : vector<1x4x384xf32> to vector<4x384xf32>
    %c0_2 = arith.constant 0 : index
    %c0_3 = arith.constant 0 : index
    %c1 = arith.constant 1 : index
    %2 = vector.load %arg1[%c0_2, %c0_3, %c1] : memref<1x4x456xf32, #tpu.memory_space<vmem>>, vector<1x4x384xf32>
    %3 = vector.shape_cast %2 : vector<1x4x384xf32> to vector<4x384xf32>
    %c0_4 = arith.constant 0 : index
    %c0_5 = arith.constant 0 : index
    %c2 = arith.constant 2 : index
    %4 = vector.load %arg1[%c0_4, %c0_5, %c2] : memref<1x4x456xf32, #tpu.memory_space<vmem>>, vector<1x4x384xf32>
    %5 = vector.shape_cast %4 : vector<1x4x384xf32> to vector<4x384xf32>
    %c0_6 = arith.constant 0 : index
    %c0_7 = arith.constant 0 : index
    %c24 = arith.constant 24 : index
    %6 = vector.load %arg1[%c0_6, %c0_7, %c24] : memref<1x4x456xf32, #tpu.memory_space<vmem>>, vector<1x4x384xf32>
    %7 = vector.shape_cast %6 : vector<1x4x384xf32> to vector<4x384xf32>
    %c0_8 = arith.constant 0 : index
    %c0_9 = arith.constant 0 : index
    %c25 = arith.constant 25 : index
    %8 = vector.load %arg1[%c0_8, %c0_9, %c25] : memref<1x4x456xf32, #tpu.memory_space<vmem>>, vector<1x4x384xf32>
    %9 = vector.shape_cast %8 : vector<1x4x384xf32> to vector<4x384xf32>
    %c0_10 = arith.constant 0 : index
    %c0_11 = arith.constant 0 : index
    %c26 = arith.constant 26 : index
    %10 = vector.load %arg1[%c0_10, %c0_11, %c26] : memref<1x4x456xf32, #tpu.memory_space<vmem>>, vector<1x4x384xf32>
    %11 = vector.shape_cast %10 : vector<1x4x384xf32> to vector<4x384xf32>
    %c0_12 = arith.constant 0 : index
    %c0_13 = arith.constant 0 : index
    %c48 = arith.constant 48 : index
    %12 = vector.load %arg1[%c0_12, %c0_13, %c48] : memref<1x4x456xf32, #tpu.memory_space<vmem>>, vector<1x4x384xf32>
    %13 = vector.shape_cast %12 : vector<1x4x384xf32> to vector<4x384xf32>
    %c0_14 = arith.constant 0 : index
    %c0_15 = arith.constant 0 : index
    %c49 = arith.constant 49 : index
    %14 = vector.load %arg1[%c0_14, %c0_15, %c49] : memref<1x4x456xf32, #tpu.memory_space<vmem>>, vector<1x4x384xf32>
    %15 = vector.shape_cast %14 : vector<1x4x384xf32> to vector<4x384xf32>
    %c0_16 = arith.constant 0 : index
    %c0_17 = arith.constant 0 : index
    %c50 = arith.constant 50 : index
    %16 = vector.load %arg1[%c0_16, %c0_17, %c50] : memref<1x4x456xf32, #tpu.memory_space<vmem>>, vector<1x4x384xf32>
    %17 = vector.shape_cast %16 : vector<1x4x384xf32> to vector<4x384xf32>
    %18 = tpu.concatenate %1, %3, %5, %7, %9, %11, %13, %15, %17 in 0 : vector<4x384xf32>, vector<4x384xf32>, vector<4x384xf32>, vector<4x384xf32>, vector<4x384xf32>, vector<4x384xf32>, vector<4x384xf32>, vector<4x384xf32>, vector<4x384xf32> -> vector<36x384xf32>
    %c0_18 = arith.constant 0 : index
    %c0_19 = arith.constant 0 : index
    %19 = vector.load %arg2[%c0_18, %c0_19] : memref<8x36xf32, #tpu.memory_space<vmem>>, vector<8x36xf32>
    %cst = arith.constant dense<0.000000e+00> : vector<8x384xf32>
    %20 = tpu.matmul %19, %18, %cst {dimension_numbers = #tpu.dot_dimension_numbers<[1], [0], [0], [1], [0, 0, 1, 1], [], []>} : vector<8x36xf32>, vector<36x384xf32>, vector<8x384xf32> -> vector<8x384xf32>
    %c0_20 = arith.constant 0 : index
    %c0_21 = arith.constant 0 : index
    %21 = vector.load %arg3[%c0_20, %c0_21] : memref<8x1xf32, #tpu.memory_space<vmem>>, vector<8x1xf32>
    %22 = vector.broadcast %21 : vector<8x1xf32> to vector<8x384xf32>
    %23 = arith.addf %20, %22 : vector<8x384xf32>
    %cst_22 = arith.constant 0.000000e+00 : f32
    %24 = vector.broadcast %cst_22 : f32 to vector<8x384xf32>
    %25 = arith.cmpf oge, %23, %24 : vector<8x384xf32>
    %cst_23 = arith.constant 2.000000e-01 : f32
    %26 = vector.broadcast %cst_23 : f32 to vector<8x384xf32>
    %27 = arith.mulf %26, %23 : vector<8x384xf32>
    %28 = arith.select %25, %23, %27 : vector<8x384xi1>, vector<8x384xf32>
    %c0_24 = arith.constant 0 : index
    %c0_25 = arith.constant 0 : index
    %c0_26 = arith.constant 0 : index
    %29 = vector.load %arg4[%c0_24, %c0_25, %c0_26] : memref<1x8x384xf32, #tpu.memory_space<vmem>>, vector<1x8x384xf32>
    %30 = vector.shape_cast %29 : vector<1x8x384xf32> to vector<8x384xf32>
    %31 = vector.shape_cast %28 : vector<8x384xf32> to vector<1x8x384xf32>
    tpu.vector_store %arg4[%c0_24, %c0_25, %c0_26], %31 {strides = array<i32>} : memref<1x8x384xf32, #tpu.memory_space<vmem>>, vector<1x8x384xf32>,
    return
  }
  func.func @transform_0(%arg0: i32) -> (i32, i32, i32) {
    %c0_i32 = arith.constant 0 : i32
    %c0_i32_0 = arith.constant 0 : i32
    %c0_i32_1 = arith.constant 0 : i32
    return %arg0, %c0_i32, %c0_i32_0 : i32, i32, i32
  }
  func.func @transform_1(%arg0: i32) -> (i32, i32) {
    %c0_i32 = arith.constant 0 : i32
    %c0_i32_0 = arith.constant 0 : i32
    %c0_i32_1 = arith.constant 0 : i32
    return %c0_i32, %c0_i32_0 : i32, i32
  }
  func.func @transform_2(%arg0: i32) -> (i32, i32) {
    %c0_i32 = arith.constant 0 : i32
    %c0_i32_0 = arith.constant 0 : i32
    %c0_i32_1 = arith.constant 0 : i32
    return %c0_i32, %c0_i32_0 : i32, i32
  }
  func.func @transform_3(%arg0: i32) -> (i32, i32, i32) {
    %c0_i32 = arith.constant 0 : i32
    %c0_i32_0 = arith.constant 0 : i32
    %c0_i32_1 = arith.constant 0 : i32
    return %arg0, %c0_i32, %c0_i32_0 : i32, i32, i32
  }
}

</mosaic_0001>

<llo_original>
// kernel: tpu_custom_call.1
$region0: #{tpu_custom_call.1}
  #allocation0 [shape = 'u32[]', space=smem, size = 0x4, offset = 0x4, fixed_abs, tag = 'smem constant byte address 0x4 - core index']
  #allocation1 [shape = 'u32[144,128]{1,0:T(1,128)}', space=vmem, size = 0x12000, scoped, tag = 'internal scratch']
  %s0 = inlined_call_operand.hbm [shape: f32[2,4,456], index: 0, kind: input, shape index: {}]
  %s1 = inlined_call_operand.vmem [shape: f32[8,36], index: 1, kind: input, shape index: {}]
  %s2 = inlined_call_operand.vmem [shape: f32[8,1], index: 2, kind: input, shape index: {}]
  %s3 = inlined_call_operand.hbm [shape: f32[2,8,384], index: 3, kind: output, shape index: {}]
  %s4 = sld [smem:[#allocation0]]
  $region49: #{tpu_custom_call.1} parent=0
    _
  %s6 = ssub.s32 1, %s4
  %s7 = scalar_select 0, %s6, %s4
  $region1: #{tpu_custom_call.1} parent=0
    #allocation2 [shape = 'u8[16384]{0}', space=vmem, size = 0x4000, scoped, tag = 'input window, operand 0']
    #allocation3 [shape = 's32[2]{0}', space=sflag, size = 0x8, scoped, tag = 'scoped memory for tpu_custom_call.1']
    #allocation4 [shape = 's32[2]{0}', space=sflag, size = 0x8, scoped, tag = 'scoped memory for tpu_custom_call.1']
    #allocation5 [shape = 'u8[24576]{0}', space=vmem, size = 0x6000, scoped, tag = 'output window, operand 0']
    %8 = vsyncpa [#allocation3], 0
    %s9 = scalar_lea.sflag [#allocation3], 1
    %10 = vsyncpa %s9, 0
    %11 = vsyncpa [#allocation4], 0
    %s12 = scalar_lea.sflag [#allocation4], 1
    %13 = vsyncpa %s12, 0
    loop: start=0, step=1, limit=4
    $region2: #{tpu_custom_call.1} parent=1 // loop_pre_header
      _
    $region3: #{tpu_custom_call.1} parent=1 // loop_header
      %s15 = sphi 0, %s19
      %p16 = scmp.ge.s32.totalorder %s15, 4
      %s25 = sphi 0, %s27
      %s28 = sphi 0, %s25
      %s29 = sphi 0, %s28
      %s45 = sphi 0, %s29
      %s49 = sphi 0, %s49
      %s51 = sphi 0, %s49
      %s52 = sphi 0, %s51
      %s66 = sphi 0, %s52
      %s70 = sphi 0, %s70
      %s72 = sphi 0, %s70
      %s73 = sphi 0, %s72
      %s87 = sphi 0, %s73
      %s93 = sphi 0, %s95
      %s96 = sphi 0, %s93
      %s97 = sphi 0, %s96
      %s113 = sphi 0, %s97
    $region4: #{tpu_custom_call.1} parent=1 // loop_header_branch
      %18 = sbr.rel (%p16) target = $region8
    $region5: #{tpu_custom_call.1} parent=1 // loop_body
      %s20 = ssub.s32 %s15, 1
      %s21 = ssub.s32 %s15, 2
      %s22 = sadd.s32 %s15, 1
      %s23 = ssub.s32 %s15, %s22
      %p24 = scmp.eq.s32.totalorder %s23, 0
      %s26 = sadd.s32 %s25, 1
      %s27 = scalar_select %p24, %s25, %s26
      %p30 = pneg %p24
      %p31 = scmp.eq.s32.totalorder %s15, 1
      %p32 = por %p30, %p31
      %p33 = scmp.ne.s32.totalorder %s25, %s28
      %p34 = scmp.eq.s32.totalorder %s15, 0
      %p35 = por %p33, %p34
      %p36 = scmp.ne.s32.totalorder %s25, %s28
      %p37 = scmp.eq.s32.totalorder %s20, 1
      %p38 = por %p36, %p37
      %p39 = scmp.ne.s32.totalorder %s28, %s29
      %p40 = scmp.eq.s32.totalorder %s20, 0
      %p41 = por %p39, %p40
      %p42 = scmp.ne.s32.totalorder %s28, %s29
      %p43 = scmp.eq.s32.totalorder %s21, 1
      %p44 = por %p42, %p43
      %p46 = scmp.ne.s32.totalorder %s29, %s45
      %p47 = scmp.eq.s32.totalorder %s21, 0
      %p48 = por %p46, %p47
      %s50 = sadd.s32 %s49, 1
      %p53 = scmp.eq.s32.totalorder %s15, 1
      %p54 = scmp.ne.s32.totalorder %s49, %s51
      %p55 = scmp.eq.s32.totalorder %s15, 0
      %p56 = por %p54, %p55
      %p57 = scmp.ne.s32.totalorder %s49, %s51
      %p58 = scmp.eq.s32.totalorder %s20, 1
      %p59 = por %p57, %p58
      %p60 = scmp.ne.s32.totalorder %s51, %s52
      %p61 = scmp.eq.s32.totalorder %s20, 0
      %p62 = por %p60, %p61
      %p63 = scmp.ne.s32.totalorder %s51, %s52
      %p64 = scmp.eq.s32.totalorder %s21, 1
      %p65 = por %p63, %p64
      %p67 = scmp.ne.s32.totalorder %s52, %s66
      %p68 = scmp.eq.s32.totalorder %s21, 0
      %p69 = por %p67, %p68
      %s71 = sadd.s32 %s70, 1
      %p74 = scmp.eq.s32.totalorder %s15, 1
      %p75 = scmp.ne.s32.totalorder %s70, %s72
      %p76 = scmp.eq.s32.totalorder %s15, 0
      %p77 = por %p75, %p76
      %p78 = scmp.ne.s32.totalorder %s70, %s72
      %p79 = scmp.eq.s32.totalorder %s20, 1
      %p80 = por %p78, %p79
      %p81 = scmp.ne.s32.totalorder %s72, %s73
      %p82 = scmp.eq.s32.totalorder %s20, 0
      %p83 = por %p81, %p82
      %p84 = scmp.ne.s32.totalorder %s72, %s73
      %p85 = scmp.eq.s32.totalorder %s21, 1
      %p86 = por %p84, %p85
      %p88 = scmp.ne.s32.totalorder %s73, %s87
      %p89 = scmp.eq.s32.totalorder %s21, 0
      %p90 = por %p88, %p89
      %s91 = ssub.s32 %s15, %s22
      %p92 = scmp.eq.s32.totalorder %s91, 0
      %s94 = sadd.s32 %s93, 1
      %s95 = scalar_select %p92, %s93, %s94
      %p98 = pneg %p92
      %p99 = scmp.eq.s32.totalorder %s15, 1
      %p100 = por %p98, %p99
      %p101 = scmp.ne.s32.totalorder %s93, %s96
      %p102 = scmp.eq.s32.totalorder %s15, 0
      %p103 = por %p101, %p102
      %p104 = scmp.ne.s32.totalorder %s93, %s96
      %p105 = scmp.eq.s32.totalorder %s20, 1
      %p106 = por %p104, %p105
      %p107 = scmp.ne.s32.totalorder %s96, %s97
      %p108 = scmp.eq.s32.totalorder %s20, 0
      %p109 = por %p107, %p108
      %p110 = scmp.ne.s32.totalorder %s96, %s97
      %p111 = scmp.eq.s32.totalorder %s21, 1
      %p112 = por %p110, %p111
      %p114 = scmp.ne.s32.totalorder %s97, %s113
      %p115 = scmp.eq.s32.totalorder %s21, 0
      %p116 = por %p114, %p115
      %p117 = scmp.le.s32.totalorder 1, %s15
      %p118 = scmp.lt.s32.totalorder %s15, 3
      %p119 = pnand %p117, %p118
      %p120 = pneg %p119
      // Predicated region
      $region9: #{tpu_custom_call.1} parent=5 // pred_check
        _
      $region10: #{tpu_custom_call.1} parent=5 // pred_check_branch
        %122 = sbr.rel (%p119) target = $region12
      $region11: #{tpu_custom_call.1} parent=5 // pred_region
        %s123 = ssub.s32 %s15, 1
        // Predicated region
        $region13: #{tpu_custom_call.1} parent=11 // pred_check
          %p124 = pneg %p62
        $region14: #{tpu_custom_call.1} parent=11 // pred_check_branch
          %126 = sbr.rel (%p124) target = $region16
        $region15: #{tpu_custom_call.1} parent=11 // pred_region
          _
        $region16: #{tpu_custom_call.1} parent=11 // pred_fallthru
          _
        // Predicated region
        $region17: #{tpu_custom_call.1} parent=11 // pred_check
          %p127 = pneg %p83
        $region18: #{tpu_custom_call.1} parent=11 // pred_check_branch
          %129 = sbr.rel (%p127) target = $region20
        $region19: #{tpu_custom_call.1} parent=11 // pred_region
          _
        $region20: #{tpu_custom_call.1} parent=11 // pred_fallthru
          _
      $region12: #{tpu_custom_call.1} parent=5 // pred_fallthru
        _
      %p130 = scmp.lt.s32.totalorder %s15, 2
      // Predicated region
      $region21: #{tpu_custom_call.1} parent=5 // pred_check
        %p131 = pneg %p130
      $region22: #{tpu_custom_call.1} parent=5 // pred_check_branch
        %133 = sbr.rel (%p131) target = $region24
      $region23: #{tpu_custom_call.1} parent=5 // pred_region
        // Predicated region
        $region25: #{tpu_custom_call.1} parent=23 // pred_check
          %p134 = pneg %p35
        $region26: #{tpu_custom_call.1} parent=23 // pred_check_branch
          %136 = sbr.rel (%p134) target = $region28
        $region27: #{tpu_custom_call.1} parent=23 // pred_region
          %s137 = sand.u32 %s25, 1
          %s138 = scalar_lea.sflag [#allocation3], %s137
          %s139 = sand.u32 %s25, 1
          %s140 = smul.addr %s139, 16
          %s141 = scalar_lea.vmem [#allocation2], %s140
          %s143 = ssub.s32 256, 256
          %144 = vsyncadd %s138, %s143
          %s145 = smul.addr %s15, 4
          %s146 = smul.addr %s145, 64
          %s147 = scalar_lea.hbm %s0, %s146
          %s149 = sshll.u32 %s141, 4
          %s150 = int_to_ptr.vmem [resolvable:$true] %s149
          %152 = dma.hbm_to_vmem [thread:$0]  %s147, 256, %s150, %s138
        $region28: #{tpu_custom_call.1} parent=23 // pred_fallthru
          _
      $region24: #{tpu_custom_call.1} parent=5 // pred_fallthru
        _
      %p153 = scmp.le.s32.totalorder 1, %s15
      %p154 = scmp.lt.s32.totalorder %s15, 3
      %p155 = pnand %p153, %p154
      %p156 = pneg %p155
      // Predicated region
      $region29: #{tpu_custom_call.1} parent=5 // pred_check
        _
      $region30: #{tpu_custom_call.1} parent=5 // pred_check_branch
        %158 = sbr.rel (%p155) target = $region32
      $region31: #{tpu_custom_call.1} parent=5 // pred_region
        %s159 = ssub.s32 %s15, 1
        %s160 = sand.u32 %s28, 1
        %s161 = scalar_lea.sflag [#allocation3], %s160
        %s162 = sand.u32 %s28, 1
        %s163 = smul.addr %s162, 16
        %s164 = scalar_lea.vmem [#allocation2], %s163
        // Predicated region
        $region33: #{tpu_custom_call.1} parent=31 // pred_check
          %p165 = pneg %p41
        $region34: #{tpu_custom_call.1} parent=31 // pred_check_branch
          %167 = sbr.rel (%p165) target = $region36
        $region35: #{tpu_custom_call.1} parent=31 // pred_region
          %168 = dma.done %s161, 256
        $region36: #{tpu_custom_call.1} parent=31 // pred_fallthru
          _
        %s169 = sand.u32 %s28, 1
        %s170 = scalar_lea.sflag [#allocation3], %s169
        %s171 = sand.u32 %s28, 1
        %s172 = smul.addr %s171, 16
        %s173 = scalar_lea.vmem [#allocation2], %s172
        %p174 = pneg %p41
        %p175 = pneg %p38
        %p176 = pneg %p62
        %p177 = pneg %p59
        %p178 = pneg %p83
        %p179 = pneg %p80
        %p180 = pneg %p109
        %p181 = pneg %p106
        %s182 = sand.u32 %s96, 1
        %s183 = scalar_lea.sflag [#allocation4], %s182
        %s184 = sand.u32 %s96, 1
        %s185 = smul.addr %s184, 24
        %s186 = scalar_lea.vmem [#allocation5], %s185
        %v187 = vld [vmem:[%s164] sm:$0xff]
        %v188 = vld [vmem:[%s164 + $0x8] sm:$0xf]
        %v189 = vld [vmem:[%s164 + $0x8] sm:$0xff]
        %v191 = vcombine.high %v187, %v187
        %v194 = vcombine.low %v187, %v187
        %v195 = vcombine.low %v189, %v189
        %196 = vrot.lane.b32.xlu0 %v194, 127
        %v197 = vpop.permute.xlu0 %196
        %198 = vrot.lane.b32.xlu0 %v187, 127
        %v199 = vpop.permute.xlu0 %198
        %200 = vrot.lane.b32.xlu0 %v195, 127
        %v201 = vpop.permute.xlu0 %200
        %202 = vrot.lane.b32.xlu0 %v189, 127
        %v203 = vpop.permute.xlu0 %202
        %vm204 = vcmask 1039360
        %v205 = vsel %vm204, %v197, %v199
        %v206 = vsel %vm204, %v199, %v201
        %v207 = vsel %vm204, %v201, %v203
        %v211 = vcombine.high %v189, %v189
        %212 = vrot.lane.b32.xlu0 %v187, 126
        %v213 = vpop.permute.xlu0 %212
        %214 = vrot.lane.b32.xlu0 %v191, 126
        %v215 = vpop.permute.xlu0 %214
        %216 = vrot.lane.b32.xlu0 %v189, 126
        %v217 = vpop.permute.xlu0 %216
        %218 = vrot.lane.b32.xlu0 %v211, 126
        %v219 = vpop.permute.xlu0 %218
        %vm220 = vcmask 1031168
        %v221 = vsel %vm220, %v213, %v215
        %v222 = vsel %vm220, %v215, %v217
        %v223 = vsel %vm220, %v217, %v219
        %227 = vrot.lane.b32.xlu0 %v194, 104
        %v228 = vpop.permute.xlu0 %227
        %229 = vrot.lane.b32.xlu0 %v187, 104
        %v230 = vpop.permute.xlu0 %229
        %231 = vrot.lane.b32.xlu0 %v195, 104
        %v232 = vpop.permute.xlu0 %231
        %233 = vrot.lane.b32.xlu0 %v189, 104
        %v234 = vpop.permute.xlu0 %233
        %vm235 = vcmask 850944
        %v236 = vsel %vm235, %v228, %v230
        %v237 = vsel %vm235, %v230, %v232
        %v238 = vsel %vm235, %v232, %v234
        %242 = vrot.lane.b32.xlu0 %v187, 103
        %v243 = vpop.permute.xlu0 %242
        %244 = vrot.lane.b32.xlu0 %v191, 103
        %v245 = vpop.permute.xlu0 %244
        %246 = vrot.lane.b32.xlu0 %v189, 103
        %v247 = vpop.permute.xlu0 %246
        %248 = vrot.lane.b32.xlu0 %v211, 103
        %v249 = vpop.permute.xlu0 %248
        %vm250 = vcmask 842752
        %v251 = vsel %vm250, %v243, %v245
        %v252 = vsel %vm250, %v245, %v247
        %v253 = vsel %vm250, %v247, %v249
        %257 = vrot.lane.b32.xlu0 %v194, 102
        %v258 = vpop.permute.xlu0 %257
        %259 = vrot.lane.b32.xlu0 %v187, 102
        %v260 = vpop.permute.xlu0 %259
        %261 = vrot.lane.b32.xlu0 %v195, 102
        %v262 = vpop.permute.xlu0 %261
        %263 = vrot.lane.b32.xlu0 %v189, 102
        %v264 = vpop.permute.xlu0 %263
        %vm265 = vcmask 834560
        %v266 = vsel %vm265, %v258, %v260
        %v267 = vsel %vm265, %v260, %v262
        %v268 = vsel %vm265, %v262, %v264
        %272 = vrot.lane.b32.xlu0 %v187, 80
        %v273 = vpop.permute.xlu0 %272
        %274 = vrot.lane.b32.xlu0 %v191, 80
        %v275 = vpop.permute.xlu0 %274
        %276 = vrot.lane.b32.xlu0 %v189, 80
        %v277 = vpop.permute.xlu0 %276
        %278 = vrot.lane.b32.xlu0 %v211, 80
        %v279 = vpop.permute.xlu0 %278
        %vm280 = vcmask 654336
        %v281 = vsel %vm280, %v273, %v275
        %v282 = vsel %vm280, %v275, %v277
        %v283 = vsel %vm280, %v277, %v279
        %287 = vrot.lane.b32.xlu0 %v194, 79
        %v288 = vpop.permute.xlu0 %287
        %289 = vrot.lane.b32.xlu0 %v187, 79
        %v290 = vpop.permute.xlu0 %289
        %291 = vrot.lane.b32.xlu0 %v195, 79
        %v292 = vpop.permute.xlu0 %291
        %293 = vrot.lane.b32.xlu0 %v189, 79
        %v294 = vpop.permute.xlu0 %293
        %vm295 = vcmask 646144
        %v296 = vsel %vm295, %v288, %v290
        %v297 = vsel %vm295, %v290, %v292
        %v298 = vsel %vm295, %v292, %v294
        %302 = vrot.lane.b32.xlu0 %v187, 78
        %v303 = vpop.permute.xlu0 %302
        %304 = vrot.lane.b32.xlu0 %v191, 78
        %v305 = vpop.permute.xlu0 %304
        %306 = vrot.lane.b32.xlu0 %v189, 78
        %v307 = vpop.permute.xlu0 %306
        %308 = vrot.lane.b32.xlu0 %v211, 78
        %v309 = vpop.permute.xlu0 %308
        %vm310 = vcmask 637952
        %v311 = vsel %vm310, %v303, %v305
        %v312 = vsel %vm310, %v305, %v307
        %v313 = vsel %vm310, %v307, %v309
        %vm314 = vcmask 1043456
        %v315 = vsel %vm314, %v187, %v205
        %v316 = vsel %vm314, %v191, %v206
        %v317 = vsel %vm314, %v188, %v207
        %v318 = vsel %vm314, %v221, %v236
        %v319 = vsel %vm314, %v222, %v237
        %v320 = vsel %vm314, %v223, %v238
        %v321 = vsel %vm314, %v251, %v266
        %v322 = vsel %vm314, %v252, %v267
        %v323 = vsel %vm314, %v253, %v268
        %v324 = vsel %vm314, %v281, %v296
        %v325 = vsel %vm314, %v282, %v297
        %v326 = vsel %vm314, %v283, %v298
        %v327 = vld [vmem:[%s1] sm:$0xff]
        %v328 = vld [vmem:[%s2] sm:$0xff]
        %330 = vset.pattern.permute.xlu0 0
        %331 = vperm.xlu0 %330, %v328
        %v332 = vpop.permute.xlu0 %331
        %vm334 = vcmask 293888
        %v336 = vsel %vm334, %v327, 0
        %v338 = vsel %vm314, %v311, 0
        %v340 = vsel %vm314, %v312, 0
        %v342 = vsel %vm314, %v313, 0
        %344 = vmatprep.subr.mxu0 %v316
        %345 = vmatpush1.msra.mxu0 %v315
        %346 = vmatprep.subr.mxu0 %v319
        %347 = vmatpush1.msra.mxu0 %v318
        %348 = vmatprep.subr.mxu0 %v322
        %349 = vmatpush1.msra.mxu0 %v321
        %350 = vmatprep.subr.mxu0 %v325
        %351 = vmatpush1.msra.mxu0 %v324
        %352 = vmatprep.subr.mxu0 %v340
        %353 = vmatpush1.msra.mxu0 %v338
        %354 = vmatprep.subr.mxu0 0.0
        %355 = vmatpush1.msra.mxu0 0.0
        %356 = vmatprep.subr.mxu0 0.0
        %357 = vmatpush1.msra.mxu0 0.0
        %358 = vmatprep.subr.mxu0 0.0
        %359 = vmatpush1.msra.mxu0 0.0
        %360 = vmatprep.subr.mxu0 0.0
        %361 = vmatpush1.msra.mxu0 0.0
        %362 = vmatprep.subr.mxu0 0.0
        %363 = vmatpush1.msra.mxu0 0.0
        %364 = vmatprep.subr.mxu0 0.0
        %365 = vmatpush1.msra.mxu0 0.0
        %366 = vmatprep.subr.mxu0 0.0
        %367 = vmatpush1.msra.mxu0 0.0
        %368 = vmatprep.subr.mxu0 0.0
        %369 = vmatpush1.msra.mxu0 0.0
        %370 = vmatprep.subr.mxu0 0.0
        %371 = vmatpush1.msra.mxu0 0.0
        %372 = vmatprep.subr.mxu0 0.0
        %373 = vmatpush1.msra.mxu0 0.0
        %374 = vmatprep.subr.mxu0 0.0
        %375 = vmatpush1.msra.mxu0 0.0
        %376 = vmatprep.subr.mxu0 0.0
        %377 = vmatpush1.msra.mxu0 0.0
        %378 = vmatprep.subr.mxu0 0.0
        %379 = vmatpush1.msra.mxu0 0.0
        %380 = vmatprep.subr.mxu0 0.0
        %381 = vmatpush1.msra.mxu0 0.0
        %382 = vmatprep.subr.mxu0 0.0
        %383 = vmatpush1.msra.mxu0 0.0
        %384 = vmatprep.subr.mxu0 0.0
        %385 = vmatpush1.msra.mxu0 0.0
        %386 = vmatprep.subr.mxu0 0.0
        %387 = vmatpush1.msra.mxu0 0.0
        %388 = vmatprep.subr.mxu0 0.0
        %389 = vmatpush1.msra.mxu0 0.0
        %390 = vmatprep.subr.mxu0 0.0
        %391 = vmatpush1.msra.mxu0 0.0
        %392 = vmatprep.subr.mxu0 0.0
        %393 = vmatpush1.msra.mxu0 0.0
        %394 = vmatprep.subr.mxu0 0.0
        %395 = vmatpush1.msra.mxu0 0.0
        %396 = vmatprep.subr.mxu0 0.0
        %397 = vmatpush1.msra.mxu0 0.0
        %398 = vmatprep.subr.mxu0 0.0
        %399 = vmatpush1.msra.mxu0 0.0
        %400 = vmatprep.subr.mxu0 0.0
        %401 = vmatpush1.msra.mxu0 0.0
        %402 = vmatprep.subr.mxu0 0.0
        %403 = vmatpush1.msra.mxu0 0.0
        %404 = vmatprep.subr.mxu0 0.0
        %405 = vmatpush1.msra.mxu0 0.0
        %406 = vmatprep.subr.mxu0 0.0
        %407 = vmatpush1.msra.mxu0 0.0
        %408 = vmatprep.mubr.f32.mxu0 0.0
        %409 = vmatmul.mubr.f32.gmra.mrb[0].mxu0 %v336
        %v410 = vpop.f32.mrb[0].mxu0
        %v411 = vadd.f32 %v332, %v410
        %v412 = vpop.f32.mrb[0].mxu0
        %v413 = vadd.f32 %v332, %v412
        %414 = vdwg.mxu0
        %415 = vmatprep.subr.mxu0 0.0
        %416 = vmatpush1.msra.mxu0 %v317
        %417 = vmatprep.subr.mxu0 0.0
        %418 = vmatpush1.msra.mxu0 %v320
        %419 = vmatprep.subr.mxu0 0.0
        %420 = vmatpush1.msra.mxu0 %v323
        %421 = vmatprep.subr.mxu0 0.0
        %422 = vmatpush1.msra.mxu0 %v326
        %423 = vmatprep.subr.mxu0 0.0
        %424 = vmatpush1.msra.mxu0 %v342
        %425 = vmatprep.subr.mxu0 0.0
        %426 = vmatpush1.msra.mxu0 0.0
        %427 = vmatprep.subr.mxu0 0.0
        %428 = vmatpush1.msra.mxu0 0.0
        %429 = vmatprep.subr.mxu0 0.0
        %430 = vmatpush1.msra.mxu0 0.0
        %431 = vmatprep.subr.mxu0 0.0
        %432 = vmatpush1.msra.mxu0 0.0
        %433 = vmatprep.subr.mxu0 0.0
        %434 = vmatpush1.msra.mxu0 0.0
        %435 = vmatprep.subr.mxu0 0.0
        %436 = vmatpush1.msra.mxu0 0.0
        %437 = vmatprep.subr.mxu0 0.0
        %438 = vmatpush1.msra.mxu0 0.0
        %439 = vmatprep.subr.mxu0 0.0
        %440 = vmatpush1.msra.mxu0 0.0
        %441 = vmatprep.subr.mxu0 0.0
        %442 = vmatpush1.msra.mxu0 0.0
        %443 = vmatprep.subr.mxu0 0.0
        %444 = vmatpush1.msra.mxu0 0.0
        %445 = vmatprep.subr.mxu0 0.0
        %446 = vmatpush1.msra.mxu0 0.0
        %447 = vmatprep.subr.mxu0 0.0
        %448 = vmatpush1.msra.mxu0 0.0
        %449 = vmatprep.subr.mxu0 0.0
        %450 = vmatpush1.msra.mxu0 0.0
        %451 = vmatprep.subr.mxu0 0.0
        %452 = vmatpush1.msra.mxu0 0.0
        %453 = vmatprep.subr.mxu0 0.0
        %454 = vmatpush1.msra.mxu0 0.0
        %455 = vmatprep.subr.mxu0 0.0
        %456 = vmatpush1.msra.mxu0 0.0
        %457 = vmatprep.subr.mxu0 0.0
        %458 = vmatpush1.msra.mxu0 0.0
        %459 = vmatprep.subr.mxu0 0.0
        %460 = vmatpush1.msra.mxu0 0.0
        %461 = vmatprep.subr.mxu0 0.0
        %462 = vmatpush1.msra.mxu0 0.0
        %463 = vmatprep.subr.mxu0 0.0
        %464 = vmatpush1.msra.mxu0 0.0
        %465 = vmatprep.subr.mxu0 0.0
        %466 = vmatpush1.msra.mxu0 0.0
        %467 = vmatprep.subr.mxu0 0.0
        %468 = vmatpush1.msra.mxu0 0.0
        %469 = vmatprep.subr.mxu0 0.0
        %470 = vmatpush1.msra.mxu0 0.0
        %471 = vmatprep.subr.mxu0 0.0
        %472 = vmatpush1.msra.mxu0 0.0
        %473 = vmatprep.subr.mxu0 0.0
        %474 = vmatpush1.msra.mxu0 0.0
        %475 = vmatprep.subr.mxu0 0.0
        %476 = vmatpush1.msra.mxu0 0.0
        %477 = vmatprep.subr.mxu0 0.0
        %478 = vmatpush1.msra.mxu0 0.0
        %479 = vmatprep.mubr.f32.mxu0 0.0
        %480 = vmatmul.mubr.f32.gmra.mrb[0].mxu0 %v336
        %v481 = vpop.f32.mrb[0].mxu0
        %v482 = vadd.f32 %v332, %v481
        %v483 = vpop.f32.mrb[0].mxu0
        %484 = vdwg.mxu0
        %vm485 = vcmp.ge.f32.partialorder %v411, 0.0
        %vm486 = vcmp.ge.f32.partialorder %v413, 0.0
        %vm487 = vcmp.ge.f32.partialorder %v482, 0.0
        %v488 = vmul.f32 %v411, 0.2
        %v489 = vmul.f32 %v413, 0.2
        %v490 = vmul.f32 %v482, 0.2
        %v491 = vsel %vm485, %v411, %v488
        %v492 = vsel %vm486, %v413, %v489
        %v493 = vsel %vm487, %v482, %v490
        %494 = vst [vmem:[%s186] sm:$0xff] %v491
        %495 = vst [vmem:[%s186 + $0x8] sm:$0xff] %v492
        %496 = vst [vmem:[%s186 + $0x10] sm:$0xff] %v493
        %s497 = sand.u32 %s96, 1
        %s498 = scalar_lea.sflag [#allocation4], %s497
        %s499 = sand.u32 %s96, 1
        %s500 = smul.addr %s499, 24
        %s501 = scalar_lea.vmem [#allocation5], %s500
        // Predicated region
        $region37: #{tpu_custom_call.1} parent=31 // pred_check
          %p502 = pneg %p106
        $region38: #{tpu_custom_call.1} parent=31 // pred_check_branch
          %504 = sbr.rel (%p502) target = $region40
        $region39: #{tpu_custom_call.1} parent=31 // pred_region
          %s506 = ssub.s32 384, 384
          %507 = vsyncadd %s498, %s506
          %s508 = smul.addr %s20, 3
          %s509 = smul.addr %s508, 128
          %s510 = scalar_lea.hbm %s3, %s509
          %s512 = sshll.u32 %s501, 4
          %s513 = int_to_ptr.vmem [resolvable:$true] %s512
          %515 = dma.vmem_to_hbm [thread:$0]  %s513, 384, %s510, %s498
        $region40: #{tpu_custom_call.1} parent=31 // pred_fallthru
          _
      $region32: #{tpu_custom_call.1} parent=5 // pred_fallthru
        _
      %p516 = scmp.le.s32.totalorder 2, %s15
      // Predicated region
      $region41: #{tpu_custom_call.1} parent=5 // pred_check
        %p517 = pneg %p516
      $region42: #{tpu_custom_call.1} parent=5 // pred_check_branch
        %519 = sbr.rel (%p517) target = $region44
      $region43: #{tpu_custom_call.1} parent=5 // pred_region
        %s520 = ssub.s32 %s15, 2
        // Predicated region
        $region45: #{tpu_custom_call.1} parent=43 // pred_check
          %p521 = pneg %p112
        $region46: #{tpu_custom_call.1} parent=43 // pred_check_branch
          %523 = sbr.rel (%p521) target = $region48
        $region47: #{tpu_custom_call.1} parent=43 // pred_region
          %s524 = sand.u32 %s97, 1
          %s525 = scalar_lea.sflag [#allocation4], %s524
          %s526 = sand.u32 %s97, 1
          %s527 = smul.addr %s526, 24
          %s528 = scalar_lea.vmem [#allocation5], %s527
          %529 = dma.done %s525, 384
        $region48: #{tpu_custom_call.1} parent=43 // pred_fallthru
          _
      $region44: #{tpu_custom_call.1} parent=5 // pred_fallthru
        _
    $region6: #{tpu_custom_call.1} parent=1 // loop_footer
      %s19 = sadd.s32 1, %s15
    $region7: #{tpu_custom_call.1} parent=1 // loop_footer_branch
      %14 = sbr.rel target = $region3
    $region8: #{tpu_custom_call.1} parent=1 // loop_exit
      _
    %530 = vsyncpa [#allocation3], 1
    %s531 = scalar_lea.sflag [#allocation3], 1
    %532 = vsyncpa %s531, 1
    %533 = vsyncpa [#allocation4], 1
    %s534 = scalar_lea.sflag [#allocation4], 1
    %535 = vsyncpa %s534, 1

</llo_original>
